<compile_context>
chip_gen: v6e
topology: v6e:2x2x1
jax: 0.10.0
libtpu: 0.0.40
codegen_flags: <defaults>
</compile_context>

<pallas_src>
import jax
import jax.numpy as jnp
from jax.experimental import pallas as pl
from jax.experimental.pallas import tpu as pltpu


def _prelu(x, a):
    # nn.PReLU with a single (scalar) learnable slope
    return jnp.where(x > 0, x, a * x)


def gdn_kernel(prelu_ref,          # SMEM (2,) f32 : [slope_fc1, slope_fc2]
               x_ref,              # VMEM (TB, Din) f32
               w1_ref, b1_ref,     # VMEM (Din, I) bf16, (1, I) f32      fc1
               w2_ref, b2_ref,     # VMEM (I, G)  bf16, (1, G) f32       fc2
               inter_ref,          # out  (TB, I) f32  -> intermediate
               prob_ref):          # out  (TB, G) f32  -> softmax(out, dim=1)
    a1 = prelu_ref[0]
    a2 = prelu_ref[1]

    # fc1 : Linear (bf16 MXU, f32 accumulate) + PReLU
    x = x_ref[...].astype(jnp.bfloat16)
    h = jnp.dot(x, w1_ref[...], preferred_element_type=jnp.float32) + b1_ref[...]
    h = _prelu(h, a1)
    inter_ref[...] = h

    # fc2 : Linear (bf16 MXU, f32 accumulate) + PReLU
    out = jnp.dot(h.astype(jnp.bfloat16), w2_ref[...],
                  preferred_element_type=jnp.float32) + b2_ref[...]
    out = _prelu(out, a2)

    # softmax over dim=1 (classes); max-subtracted for stability, reciprocal on EUP
    m = jnp.max(out, axis=1, keepdims=True)
    e = jnp.exp(out - m)
    denom = jnp.sum(e, axis=1, keepdims=True)
    prob_ref[...] = e * pl.reciprocal(denom, approx=False)


def gdn_forward(x, params, *, block_b=16):
    """x: (B, inplanes) f32. Returns (intermediate (B, I) f32, group_prob (B, G) f32)."""
    prelu, w1, b1, w2, b2 = params
    B, Din = x.shape
    I = w1.shape[1]
    G = w2.shape[1]

    tb = min(block_b, B)
    assert B % tb == 0, "batch must be a multiple of the batch tile"
    assert tb % 8 == 0, "batch tile must be a multiple of 8 (sublane)"

    # Weights stored/streamed as bf16: halves DMA bytes & VMEM residency, MXU-native.
    w1_bf = w1.astype(jnp.bfloat16)
    w2_bf = w2.astype(jnp.bfloat16)

    grid_spec = pltpu.PrefetchScalarGridSpec(
        num_scalar_prefetch=0,
        grid=(B // tb,),
        in_specs=[
            pl.BlockSpec(memory_space=pltpu.MemorySpace.SMEM),   # prelu slopes (scalars)
            pl.BlockSpec((tb, Din), lambda i: (i, 0)),           # x : batch-tiled
            pl.BlockSpec((Din, I), lambda i: (0, 0)),            # w1: VMEM-resident
            pl.BlockSpec((1, I),   lambda i: (0, 0)),            # b1: VMEM-resident
            pl.BlockSpec((I, G),   lambda i: (0, 0)),            # w2: VMEM-resident
            pl.BlockSpec((1, G),   lambda i: (0, 0)),            # b2: VMEM-resident
        ],
        out_specs=[
            pl.BlockSpec((tb, I), lambda i: (i, 0)),             # intermediate
            pl.BlockSpec((tb, G), lambda i: (i, 0)),             # softmax probs
        ],
    )

    # VMEM footprint at these / realistic sizes (bf16 weights + 2x double-buffered
    # (tb, Din)/(tb, I) tiles) is far below every chip's default scoped VMEM limit
    # (16 MiB v5e / 32 MiB v6e / 32-of-64 MiB v7x), so no vmem_limit_bytes override
    # is needed; re-budget tb if Din/I grow to fastreid production sizes.
    fn = pl.pallas_call(
        gdn_kernel,
        out_shape=(jax.ShapeDtypeStruct((B, I), jnp.float32),
                   jax.ShapeDtypeStruct((B, G), jnp.float32)),
        grid_spec=grid_spec,
        compiler_params=pltpu.CompilerParams(
            dimension_semantics=("parallel",)),   # batch tiles are independent
    )
    inter, prob = fn(prelu, x, w1_bf, b1, w2_bf, b2)
    return inter, prob


def gdn_reference(x, params):
    """Pure-JAX f32 reference mirroring the PyTorch GDN forward."""
    prelu, w1, b1, w2, b2 = params
    inter = _prelu(x @ w1 + b1, prelu[0])
    out = _prelu(inter @ w2 + b2, prelu[1])
    prob = jax.nn.softmax(out, axis=1)
    return inter, prob


if __name__ == "__main__":
    B = 64                 # batch (tiled by 16 -> grid of 4)
    inplanes = 64          # backbone feature dim
    intermediate_dim = 256 # GDN default
    outplanes = 8          # number of groups / classes for the softmax head

    key = jax.random.PRNGKey(0)
    kx, k1, k2, k3, k4 = jax.random.split(key, 5)
    scale = 0.05
    x = jax.random.normal(kx, (B, inplanes), jnp.float32)
    w1 = scale * jax.random.normal(k1, (inplanes, intermediate_dim), jnp.float32)
    b1 = scale * jax.random.normal(k2, (1, intermediate_dim), jnp.float32)
    w2 = scale * jax.random.normal(k3, (intermediate_dim, outplanes), jnp.float32)
    b2 = scale * jax.random.normal(k4, (1, outplanes), jnp.float32)
    prelu = jnp.full((2,), 0.25, jnp.float32)   # torch nn.PReLU default init
    params = (prelu, w1, b1, w2, b2)

    inter, prob = jax.block_until_ready(gdn_forward(x, params, block_b=16))

    # sanity check against pure-JAX f32 reference; matmul inputs are bf16 (f32
    # accumulation) in the kernel, so tolerances are relaxed accordingly.
    r_inter, r_prob = gdn_reference(x, params)
    assert jnp.allclose(inter, r_inter, atol=3e-2, rtol=3e-2)
    assert jnp.allclose(prob, r_prob, atol=1e-2, rtol=1e-2)
    assert jnp.allclose(jnp.sum(prob, axis=1), 1.0, atol=1e-5)

    print("KERNEL_OK")
</pallas_src>

<mosaic_0001>
module attributes {stable_mosaic.version = 11 : i64} {
  func.func @gdn_kernel(%arg0: i32, %arg1: memref<2xf32, #tpu.memory_space<smem>>, %arg2: memref<16x64xf32, #tpu.memory_space<vmem>>, %arg3: memref<64x256xbf16, #tpu.memory_space<vmem>>, %arg4: memref<1x256xf32, #tpu.memory_space<vmem>>, %arg5: memref<256x8xbf16, #tpu.memory_space<vmem>>, %arg6: memref<1x8xf32, #tpu.memory_space<vmem>>, %arg7: memref<16x256xf32, #tpu.memory_space<vmem>>, %arg8: memref<16x8xf32, #tpu.memory_space<vmem>>) attributes {dimension_semantics = [#tpu.dimension_semantics<parallel>], iteration_bounds = array<i64: 4>, scalar_prefetch = 0 : i64, scratch_operands = 0 : i64, tpu.core_type = #tpu.core_type<tc>, window_params = [{transform_indices = @transform_0, window_bounds = array<i64: 2>}, {transform_indices = @transform_1, window_bounds = array<i64: 16, 64>}, {pipeline_mode = #tpu.pipeline_mode<synchronous>, transform_indices = @transform_2, window_bounds = array<i64: 64, 256>}, {pipeline_mode = #tpu.pipeline_mode<synchronous>, transform_indices = @transform_3, window_bounds = array<i64: 1, 256>}, {pipeline_mode = #tpu.pipeline_mode<synchronous>, transform_indices = @transform_4, window_bounds = array<i64: 256, 8>}, {pipeline_mode = #tpu.pipeline_mode<synchronous>, transform_indices = @transform_5, window_bounds = array<i64: 1, 8>}, {transform_indices = @transform_6, window_bounds = array<i64: 16, 256>}, {transform_indices = @transform_7, window_bounds = array<i64: 16, 8>}]} {
    %c0 = arith.constant 0 : index
    %0 = memref.load %arg1[%c0] : memref<2xf32, #tpu.memory_space<smem>>
    %c1 = arith.constant 1 : index
    %1 = memref.load %arg1[%c1] : memref<2xf32, #tpu.memory_space<smem>>
    %c0_0 = arith.constant 0 : index
    %c0_1 = arith.constant 0 : index
    %2 = vector.load %arg2[%c0_0, %c0_1] : memref<16x64xf32, #tpu.memory_space<vmem>>, vector<16x64xf32>
    %3 = arith.truncf %2 : vector<16x64xf32> to vector<16x64xbf16>
    %c0_2 = arith.constant 0 : index
    %c0_3 = arith.constant 0 : index
    %4 = vector.load %arg3[%c0_2, %c0_3] : memref<64x256xbf16, #tpu.memory_space<vmem>>, vector<64x256xbf16>
    %cst = arith.constant dense<0.000000e+00> : vector<16x256xf32>
    %5 = tpu.matmul %3, %4, %cst {dimension_numbers = #tpu.dot_dimension_numbers<[1], [0], [0], [1], [0, 0, 1, 1], [], []>} : vector<16x64xbf16>, vector<64x256xbf16>, vector<16x256xf32> -> vector<16x256xf32>
    %c0_4 = arith.constant 0 : index
    %c0_5 = arith.constant 0 : index
    %6 = vector.load %arg4[%c0_4, %c0_5] : memref<1x256xf32, #tpu.memory_space<vmem>>, vector<1x256xf32>
    %7 = vector.broadcast %6 : vector<1x256xf32> to vector<16x256xf32>
    %8 = arith.addf %5, %7 : vector<16x256xf32>
    %cst_6 = arith.constant 0.000000e+00 : f32
    %9 = vector.broadcast %cst_6 : f32 to vector<16x256xf32>
    %10 = arith.cmpf ogt, %8, %9 : vector<16x256xf32>
    %11 = vector.broadcast %0 : f32 to vector<16x256xf32>
    %12 = arith.mulf %11, %8 : vector<16x256xf32>
    %13 = arith.select %10, %8, %12 : vector<16x256xi1>, vector<16x256xf32>
    %c0_7 = arith.constant 0 : index
    %c0_8 = arith.constant 0 : index
    %14 = vector.load %arg7[%c0_7, %c0_8] : memref<16x256xf32, #tpu.memory_space<vmem>>, vector<16x256xf32>
    tpu.vector_store %arg7[%c0_7, %c0_8], %13 {strides = array<i32>} : memref<16x256xf32, #tpu.memory_space<vmem>>, vector<16x256xf32>,
    %15 = arith.truncf %13 : vector<16x256xf32> to vector<16x256xbf16>
    %c0_9 = arith.constant 0 : index
    %c0_10 = arith.constant 0 : index
    %16 = vector.load %arg5[%c0_9, %c0_10] : memref<256x8xbf16, #tpu.memory_space<vmem>>, vector<256x8xbf16>
    %cst_11 = arith.constant dense<0.000000e+00> : vector<16x8xf32>
    %17 = tpu.matmul %15, %16, %cst_11 {dimension_numbers = #tpu.dot_dimension_numbers<[1], [0], [0], [1], [0, 0, 1, 1], [], []>} : vector<16x256xbf16>, vector<256x8xbf16>, vector<16x8xf32> -> vector<16x8xf32>
    %c0_12 = arith.constant 0 : index
    %c0_13 = arith.constant 0 : index
    %18 = vector.load %arg6[%c0_12, %c0_13] : memref<1x8xf32, #tpu.memory_space<vmem>>, vector<1x8xf32>
    %19 = vector.broadcast %18 : vector<1x8xf32> to vector<16x8xf32>
    %20 = arith.addf %17, %19 : vector<16x8xf32>
    %cst_14 = arith.constant 0.000000e+00 : f32
    %21 = vector.broadcast %cst_14 : f32 to vector<16x8xf32>
    %22 = arith.cmpf ogt, %20, %21 : vector<16x8xf32>
    %23 = vector.broadcast %1 : f32 to vector<16x8xf32>
    %24 = arith.mulf %23, %20 : vector<16x8xf32>
    %25 = arith.select %22, %20, %24 : vector<16x8xi1>, vector<16x8xf32>
    %cst_15 = arith.constant dense<0xFF800000> : vector<16xf32>
    %26 = vector.multi_reduction <maximumf>, %25, %cst_15 [1] : vector<16x8xf32> to vector<16xf32>
    %27 = vector.shape_cast %26 : vector<16xf32> to vector<16x1xf32>
    %28 = vector.broadcast %27 : vector<16x1xf32> to vector<16x8xf32>
    %29 = arith.subf %25, %28 : vector<16x8xf32>
    %30 = math.exp %29 : vector<16x8xf32>
    %cst_16 = arith.constant dense<0.000000e+00> : vector<16xf32>
    %31 = vector.multi_reduction <add>, %30, %cst_16 [1] : vector<16x8xf32> to vector<16xf32>
    %32 = vector.shape_cast %31 : vector<16xf32> to vector<16x1xf32>
    %33 = tpu.reciprocal %32 : vector<16x1xf32> -> vector<16x1xf32>
    %34 = vector.broadcast %33 : vector<16x1xf32> to vector<16x8xf32>
    %35 = arith.mulf %30, %34 : vector<16x8xf32>
    %c0_17 = arith.constant 0 : index
    %c0_18 = arith.constant 0 : index
    %36 = vector.load %arg8[%c0_17, %c0_18] : memref<16x8xf32, #tpu.memory_space<vmem>>, vector<16x8xf32>
    tpu.vector_store %arg8[%c0_17, %c0_18], %35 {strides = array<i32>} : memref<16x8xf32, #tpu.memory_space<vmem>>, vector<16x8xf32>,
    return
  }
  func.func @transform_0(%arg0: i32) -> i32 {
    %c0_i32 = arith.constant 0 : i32
    %c0_i32_0 = arith.constant 0 : i32
    return %c0_i32 : i32
  }
  func.func @transform_1(%arg0: i32) -> (i32, i32) {
    %c0_i32 = arith.constant 0 : i32
    %c0_i32_0 = arith.constant 0 : i32
    return %arg0, %c0_i32 : i32, i32
  }
  func.func @transform_2(%arg0: i32) -> (i32, i32) {
    %c0_i32 = arith.constant 0 : i32
    %c0_i32_0 = arith.constant 0 : i32
    %c0_i32_1 = arith.constant 0 : i32
    return %c0_i32, %c0_i32_0 : i32, i32
  }
  func.func @transform_3(%arg0: i32) -> (i32, i32) {
    %c0_i32 = arith.constant 0 : i32
    %c0_i32_0 = arith.constant 0 : i32
    %c0_i32_1 = arith.constant 0 : i32
    return %c0_i32, %c0_i32_0 : i32, i32
  }
  func.func @transform_4(%arg0: i32) -> (i32, i32) {
    %c0_i32 = arith.constant 0 : i32
    %c0_i32_0 = arith.constant 0 : i32
    %c0_i32_1 = arith.constant 0 : i32
    return %c0_i32, %c0_i32_0 : i32, i32
  }
  func.func @transform_5(%arg0: i32) -> (i32, i32) {
    %c0_i32 = arith.constant 0 : i32
    %c0_i32_0 = arith.constant 0 : i32
    %c0_i32_1 = arith.constant 0 : i32
    return %c0_i32, %c0_i32_0 : i32, i32
  }
  func.func @transform_6(%arg0: i32) -> (i32, i32) {
    %c0_i32 = arith.constant 0 : i32
    %c0_i32_0 = arith.constant 0 : i32
    return %arg0, %c0_i32 : i32, i32
  }
  func.func @transform_7(%arg0: i32) -> (i32, i32) {
    %c0_i32 = arith.constant 0 : i32
    %c0_i32_0 = arith.constant 0 : i32
    return %arg0, %c0_i32 : i32, i32
  }
}

</mosaic_0001>

<llo_original>
// kernel: tpu_custom_call.1
$region0: #{tpu_custom_call.1}
  #allocation0 [shape = 'u32[]', space=smem, size = 0x4, offset = 0x4, fixed_abs, tag = 'smem constant byte address 0x4 - core index']
  #allocation1 [shape = 'u32[144,128]{1,0:T(1,128)}', space=vmem, size = 0x12000, scoped, tag = 'internal scratch']
  %s0 = inlined_call_operand.vmem [shape: f32[2], index: 0, kind: input, shape index: {}]
  %s1 = inlined_call_operand.vmem [shape: f32[64,64], index: 1, kind: input, shape index: {}]
  %s2 = inlined_call_operand.vmem [shape: bf16[64,256], index: 2, kind: input, shape index: {}]
  %s3 = inlined_call_operand.vmem [shape: f32[1,256], index: 3, kind: input, shape index: {}]
  %s4 = inlined_call_operand.vmem [shape: bf16[256,8], index: 4, kind: input, shape index: {}]
  %s5 = inlined_call_operand.vmem [shape: f32[1,8], index: 5, kind: input, shape index: {}]
  %s6 = inlined_call_operand.hbm [shape: f32[64,256], index: 6, kind: output, shape index: {0}]
  %s7 = inlined_call_operand.vmem [shape: f32[64,8], index: 7, kind: output, shape index: {1}]
  %8 = xla_tuple %s6, %s7
  %s9 = sld [smem:[#allocation0]]
  $region69: #{tpu_custom_call.1} parent=0
    _
  %s11 = ssub.s32 1, %s9
  %s12 = scalar_select 0, %s11, %s9
  $region1: #{tpu_custom_call.1} parent=0
    #allocation2 [shape = 'u8[512]{0}', space=smem, size = 0x200, scoped, tag = 'input window, operand 0, single buffered']
    #allocation3 [shape = 's32[2]{0}', space=sflag, size = 0x8, scoped, tag = 'scoped memory for tpu_custom_call.1']
    #allocation4 [shape = 's32[2]{0}', space=sflag, size = 0x8, scoped, tag = 'scoped memory for tpu_custom_call.1']
    #allocation5 [shape = 'u8[32768]{0}', space=vmem, size = 0x8000, scoped, tag = 'output window, operand 0']
    %13 = vsyncpa [#allocation4], 0
    %14 = vsyncpa [#allocation3], 0
    %s15 = scalar_lea.sflag [#allocation3], 1
    %16 = vsyncpa %s15, 0
    loop: start=0, step=1, limit=6
    $region2: #{tpu_custom_call.1} parent=1 // loop_pre_header
      _
    $region3: #{tpu_custom_call.1} parent=1 // loop_header
      %s18 = sphi 0, %s22
      %p19 = scmp.ge.s32.totalorder %s18, 6
      %s26 = sphi 0, %s26
      %s28 = sphi 0, %s26
      %s29 = sphi 0, %s28
      %s43 = sphi 0, %s29
      %s49 = sphi 0, %s51
      %s52 = sphi 0, %s49
      %s53 = sphi 0, %s52
      %s69 = sphi 0, %s53
      %s73 = sphi 0, %s73
      %s75 = sphi 0, %s73
      %s76 = sphi 0, %s75
      %s90 = sphi 0, %s76
      %s94 = sphi 0, %s94
      %s96 = sphi 0, %s94
      %s97 = sphi 0, %s96
      %s111 = sphi 0, %s97
      %s115 = sphi 0, %s115
      %s117 = sphi 0, %s115
      %s118 = sphi 0, %s117
      %s132 = sphi 0, %s118
      %s136 = sphi 0, %s136
      %s138 = sphi 0, %s136
      %s139 = sphi 0, %s138
      %s153 = sphi 0, %s139
      %s159 = sphi 0, %s161
      %s162 = sphi 0, %s159
      %s163 = sphi 0, %s162
      %s179 = sphi 0, %s163
      %s185 = sphi 0, %s187
      %s188 = sphi 0, %s185
      %s189 = sphi 0, %s188
      %s205 = sphi 0, %s189
    $region4: #{tpu_custom_call.1} parent=1 // loop_header_branch
      %21 = sbr.rel (%p19) target = $region8
    $region5: #{tpu_custom_call.1} parent=1 // loop_body
      %s23 = ssub.s32 %s18, 1
      %s24 = ssub.s32 %s18, 2
      %s25 = sadd.s32 %s18, 1
      %s27 = sadd.s32 %s26, 1
      %p30 = scmp.eq.s32.totalorder %s18, 3
      %p31 = scmp.ne.s32.totalorder %s26, %s28
      %p32 = scmp.eq.s32.totalorder %s18, 0
      %p33 = por %p31, %p32
      %p34 = scmp.ne.s32.totalorder %s26, %s28
      %p35 = scmp.eq.s32.totalorder %s23, 3
      %p36 = por %p34, %p35
      %p37 = scmp.ne.s32.totalorder %s28, %s29
      %p38 = scmp.eq.s32.totalorder %s23, 0
      %p39 = por %p37, %p38
      %p40 = scmp.ne.s32.totalorder %s28, %s29
      %p41 = scmp.eq.s32.totalorder %s24, 3
      %p42 = por %p40, %p41
      %p44 = scmp.ne.s32.totalorder %s29, %s43
      %p45 = scmp.eq.s32.totalorder %s24, 0
      %p46 = por %p44, %p45
      %s47 = ssub.s32 %s18, %s25
      %p48 = scmp.eq.s32.totalorder %s47, 0
      %s50 = sadd.s32 %s49, 1
      %s51 = scalar_select %p48, %s49, %s50
      %p54 = pneg %p48
      %p55 = scmp.eq.s32.totalorder %s18, 3
      %p56 = por %p54, %p55
      %p57 = scmp.ne.s32.totalorder %s49, %s52
      %p58 = scmp.eq.s32.totalorder %s18, 0
      %p59 = por %p57, %p58
      %p60 = scmp.ne.s32.totalorder %s49, %s52
      %p61 = scmp.eq.s32.totalorder %s23, 3
      %p62 = por %p60, %p61
      %p63 = scmp.ne.s32.totalorder %s52, %s53
      %p64 = scmp.eq.s32.totalorder %s23, 0
      %p65 = por %p63, %p64
      %p66 = scmp.ne.s32.totalorder %s52, %s53
      %p67 = scmp.eq.s32.totalorder %s24, 3
      %p68 = por %p66, %p67
      %p70 = scmp.ne.s32.totalorder %s53, %s69
      %p71 = scmp.eq.s32.totalorder %s24, 0
      %p72 = por %p70, %p71
      %s74 = sadd.s32 %s73, 1
      %p77 = scmp.eq.s32.totalorder %s18, 3
      %p78 = scmp.ne.s32.totalorder %s73, %s75
      %p79 = scmp.eq.s32.totalorder %s18, 0
      %p80 = por %p78, %p79
      %p81 = scmp.ne.s32.totalorder %s73, %s75
      %p82 = scmp.eq.s32.totalorder %s23, 3
      %p83 = por %p81, %p82
      %p84 = scmp.ne.s32.totalorder %s75, %s76
      %p85 = scmp.eq.s32.totalorder %s23, 0
      %p86 = por %p84, %p85
      %p87 = scmp.ne.s32.totalorder %s75, %s76
      %p88 = scmp.eq.s32.totalorder %s24, 3
      %p89 = por %p87, %p88
      %p91 = scmp.ne.s32.totalorder %s76, %s90
      %p92 = scmp.eq.s32.totalorder %s24, 0
      %p93 = por %p91, %p92
      %s95 = sadd.s32 %s94, 1
      %p98 = scmp.eq.s32.totalorder %s18, 3
      %p99 = scmp.ne.s32.totalorder %s94, %s96
      %p100 = scmp.eq.s32.totalorder %s18, 0
      %p101 = por %p99, %p100
      %p102 = scmp.ne.s32.totalorder %s94, %s96
      %p103 = scmp.eq.s32.totalorder %s23, 3
      %p104 = por %p102, %p103
      %p105 = scmp.ne.s32.totalorder %s96, %s97
      %p106 = scmp.eq.s32.totalorder %s23, 0
      %p107 = por %p105, %p106
      %p108 = scmp.ne.s32.totalorder %s96, %s97
      %p109 = scmp.eq.s32.totalorder %s24, 3
      %p110 = por %p108, %p109
      %p112 = scmp.ne.s32.totalorder %s97, %s111
      %p113 = scmp.eq.s32.totalorder %s24, 0
      %p114 = por %p112, %p113
      %s116 = sadd.s32 %s115, 1
      %p119 = scmp.eq.s32.totalorder %s18, 3
      %p120 = scmp.ne.s32.totalorder %s115, %s117
      %p121 = scmp.eq.s32.totalorder %s18, 0
      %p122 = por %p120, %p121
      %p123 = scmp.ne.s32.totalorder %s115, %s117
      %p124 = scmp.eq.s32.totalorder %s23, 3
      %p125 = por %p123, %p124
      %p126 = scmp.ne.s32.totalorder %s117, %s118
      %p127 = scmp.eq.s32.totalorder %s23, 0
      %p128 = por %p126, %p127
      %p129 = scmp.ne.s32.totalorder %s117, %s118
      %p130 = scmp.eq.s32.totalorder %s24, 3
      %p131 = por %p129, %p130
      %p133 = scmp.ne.s32.totalorder %s118, %s132
      %p134 = scmp.eq.s32.totalorder %s24, 0
      %p135 = por %p133, %p134
      %s137 = sadd.s32 %s136, 1
      %p140 = scmp.eq.s32.totalorder %s18, 3
      %p141 = scmp.ne.s32.totalorder %s136, %s138
      %p142 = scmp.eq.s32.totalorder %s18, 0
      %p143 = por %p141, %p142
      %p144 = scmp.ne.s32.totalorder %s136, %s138
      %p145 = scmp.eq.s32.totalorder %s23, 3
      %p146 = por %p144, %p145
      %p147 = scmp.ne.s32.totalorder %s138, %s139
      %p148 = scmp.eq.s32.totalorder %s23, 0
      %p149 = por %p147, %p148
      %p150 = scmp.ne.s32.totalorder %s138, %s139
      %p151 = scmp.eq.s32.totalorder %s24, 3
      %p152 = por %p150, %p151
      %p154 = scmp.ne.s32.totalorder %s139, %s153
      %p155 = scmp.eq.s32.totalorder %s24, 0
      %p156 = por %p154, %p155
      %s157 = ssub.s32 %s18, %s25
      %p158 = scmp.eq.s32.totalorder %s157, 0
      %s160 = sadd.s32 %s159, 1
      %s161 = scalar_select %p158, %s159, %s160
      %p164 = pneg %p158
      %p165 = scmp.eq.s32.totalorder %s18, 3
      %p166 = por %p164, %p165
      %p167 = scmp.ne.s32.totalorder %s159, %s162
      %p168 = scmp.eq.s32.totalorder %s18, 0
      %p169 = por %p167, %p168
      %p170 = scmp.ne.s32.totalorder %s159, %s162
      %p171 = scmp.eq.s32.totalorder %s23, 3
      %p172 = por %p170, %p171
      %p173 = scmp.ne.s32.totalorder %s162, %s163
      %p174 = scmp.eq.s32.totalorder %s23, 0
      %p175 = por %p173, %p174
      %p176 = scmp.ne.s32.totalorder %s162, %s163
      %p177 = scmp.eq.s32.totalorder %s24, 3
      %p178 = por %p176, %p177
      %p180 = scmp.ne.s32.totalorder %s163, %s179
      %p181 = scmp.eq.s32.totalorder %s24, 0
      %p182 = por %p180, %p181
      %s183 = ssub.s32 %s18, %s25
      %p184 = scmp.eq.s32.totalorder %s183, 0
      %s186 = sadd.s32 %s185, 1
      %s187 = scalar_select %p184, %s185, %s186
      %p190 = pneg %p184
      %p191 = scmp.eq.s32.totalorder %s18, 3
      %p192 = por %p190, %p191
      %p193 = scmp.ne.s32.totalorder %s185, %s188
      %p194 = scmp.eq.s32.totalorder %s18, 0
      %p195 = por %p193, %p194
      %p196 = scmp.ne.s32.totalorder %s185, %s188
      %p197 = scmp.eq.s32.totalorder %s23, 3
      %p198 = por %p196, %p197
      %p199 = scmp.ne.s32.totalorder %s188, %s189
      %p200 = scmp.eq.s32.totalorder %s23, 0
      %p201 = por %p199, %p200
      %p202 = scmp.ne.s32.totalorder %s188, %s189
      %p203 = scmp.eq.s32.totalorder %s24, 3
      %p204 = por %p202, %p203
      %p206 = scmp.ne.s32.totalorder %s189, %s205
      %p207 = scmp.eq.s32.totalorder %s24, 0
      %p208 = por %p206, %p207
      %p209 = scmp.le.s32.totalorder 1, %s18
      %p210 = scmp.lt.s32.totalorder %s18, 5
      %p211 = pnand %p209, %p210
      %p212 = pneg %p211
      // Predicated region
      $region9: #{tpu_custom_call.1} parent=5 // pred_check
        _
      $region10: #{tpu_custom_call.1} parent=5 // pred_check_branch
        %214 = sbr.rel (%p211) target = $region12
      $region11: #{tpu_custom_call.1} parent=5 // pred_region
        %s215 = ssub.s32 %s18, 1
        // Predicated region
        $region13: #{tpu_custom_call.1} parent=11 // pred_check
          %p216 = pneg %p39
        $region14: #{tpu_custom_call.1} parent=11 // pred_check_branch
          %218 = sbr.rel (%p216) target = $region16
        $region15: #{tpu_custom_call.1} parent=11 // pred_region
          %s220 = ssub.s32 16, 16
          %221 = vsyncadd [#allocation4], %s220
          %s223 = sshll.u32 %s0, 4
          %s224 = int_to_ptr.vmem [resolvable:$true] %s223
          %226 = dma.vmem_to_smem %s224, 16, [#allocation2], [#allocation4]
        $region16: #{tpu_custom_call.1} parent=11 // pred_fallthru
          _
        // Predicated region
        $region17: #{tpu_custom_call.1} parent=11 // pred_check
          %p227 = pneg %p86
        $region18: #{tpu_custom_call.1} parent=11 // pred_check_branch
          %229 = sbr.rel (%p227) target = $region20
        $region19: #{tpu_custom_call.1} parent=11 // pred_region
          _
        $region20: #{tpu_custom_call.1} parent=11 // pred_fallthru
          _
        // Predicated region
        $region21: #{tpu_custom_call.1} parent=11 // pred_check
          %p230 = pneg %p107
        $region22: #{tpu_custom_call.1} parent=11 // pred_check_branch
          %232 = sbr.rel (%p230) target = $region24
        $region23: #{tpu_custom_call.1} parent=11 // pred_region
          _
        $region24: #{tpu_custom_call.1} parent=11 // pred_fallthru
          _
        // Predicated region
        $region25: #{tpu_custom_call.1} parent=11 // pred_check
          %p233 = pneg %p128
        $region26: #{tpu_custom_call.1} parent=11 // pred_check_branch
          %235 = sbr.rel (%p233) target = $region28
        $region27: #{tpu_custom_call.1} parent=11 // pred_region
          _
        $region28: #{tpu_custom_call.1} parent=11 // pred_fallthru
          _
        // Predicated region
        $region29: #{tpu_custom_call.1} parent=11 // pred_check
          %p236 = pneg %p149
        $region30: #{tpu_custom_call.1} parent=11 // pred_check_branch
          %238 = sbr.rel (%p236) target = $region32
        $region31: #{tpu_custom_call.1} parent=11 // pred_region
          _
        $region32: #{tpu_custom_call.1} parent=11 // pred_fallthru
          _
      $region12: #{tpu_custom_call.1} parent=5 // pred_fallthru
        _
      %p239 = scmp.lt.s32.totalorder %s18, 4
      // Predicated region
      $region33: #{tpu_custom_call.1} parent=5 // pred_check
        %p240 = pneg %p239
      $region34: #{tpu_custom_call.1} parent=5 // pred_check_branch
        %242 = sbr.rel (%p240) target = $region36
      $region35: #{tpu_custom_call.1} parent=5 // pred_region
        // Predicated region
        $region37: #{tpu_custom_call.1} parent=35 // pred_check
          %p243 = pneg %p59
        $region38: #{tpu_custom_call.1} parent=35 // pred_check_branch
          %245 = sbr.rel (%p243) target = $region40
        $region39: #{tpu_custom_call.1} parent=35 // pred_region
          %s246 = smul.u32 2, %s18
          %p247 = scmp.lt.s32.totalorder %s246, 7
          %s248 = scalar_select %p247, %s246, 7
          %s249 = smul.addr %s248, 8
          %s250 = scalar_lea.vmem %s1, %s249
          %s251 = smul.u32 2, %s18
        $region40: #{tpu_custom_call.1} parent=35 // pred_fallthru
          _
      $region36: #{tpu_custom_call.1} parent=5 // pred_fallthru
        _
      %p252 = scmp.le.s32.totalorder 1, %s18
      %p253 = scmp.lt.s32.totalorder %s18, 5
      %p254 = pnand %p252, %p253
      %p255 = pneg %p254
      // Predicated region
      $region41: #{tpu_custom_call.1} parent=5 // pred_check
        _
      $region42: #{tpu_custom_call.1} parent=5 // pred_check_branch
        %257 = sbr.rel (%p254) target = $region44
      $region43: #{tpu_custom_call.1} parent=5 // pred_region
        %s258 = ssub.s32 %s18, 1
        // Predicated region
        $region45: #{tpu_custom_call.1} parent=43 // pred_check
          %p259 = pneg %p39
        $region46: #{tpu_custom_call.1} parent=43 // pred_check_branch
          %261 = sbr.rel (%p259) target = $region48
        $region47: #{tpu_custom_call.1} parent=43 // pred_region
          %262 = dma.done [#allocation4], 16
        $region48: #{tpu_custom_call.1} parent=43 // pred_fallthru
          _
        %263 = sfence
        %p264 = pneg %p39
        %p265 = pneg %p36
        %s266 = smul.u32 2, %s23
        %p267 = scmp.lt.s32.totalorder %s266, 7
        %s268 = scalar_select %p267, %s266, 7
        %s269 = smul.addr %s268, 8
        %s270 = scalar_lea.vmem %s1, %s269
        %p271 = pneg %p65
        %p272 = pneg %p62
        %p273 = pneg %p86
        %p274 = pneg %p83
        %p275 = pneg %p107
        %p276 = pneg %p104
        %p277 = pneg %p128
        %p278 = pneg %p125
        %p279 = pneg %p149
        %p280 = pneg %p146
        %p281 = pneg %p175
        %p282 = pneg %p172
        %s283 = sand.u32 %s162, 1
        %s284 = scalar_lea.sflag [#allocation3], %s283
        %s285 = sand.u32 %s162, 1
        %s286 = smul.addr %s285, 32
        %s287 = scalar_lea.vmem [#allocation5], %s286
        %p288 = pneg %p201
        %p289 = pneg %p198
        %s290 = smul.u32 2, %s23
        %p291 = scmp.lt.s32.totalorder %s290, 7
        %s292 = scalar_select %p291, %s290, 7
        %s293 = smul.addr %s292, 8
        %s294 = scalar_lea.vmem %s7, %s293
        %s295 = smul.u32 2, %s23
        %p296 = scmp.lt.s32.totalorder %s295, 7
        %s297 = scalar_select %p296, %s295, 7
        %s298 = smul.addr %s297, 8
        %s299 = scalar_lea.vmem %s1, %s298
        %s300 = smul.u32 2, %s23
        %s301 = smul.u32 2, %s23
        %s302 = smul.u32 2, %s23
        %p303 = scmp.lt.s32.totalorder %s302, 7
        %s304 = scalar_select %p303, %s302, 7
        %s305 = smul.addr %s304, 8
        %s306 = scalar_lea.vmem %s7, %s305
        %s307 = smul.u32 2, %s23
        %s309 = sld [smem:[#allocation2]]
        %s310 = sld [smem:[#allocation2 + $0x1]]
        %v311 = vld [vmem:[%s299] sm:$0xff]
        %v312 = vld [vmem:[%s299 + $0x8] sm:$0xff]
        %v313 = vpack.c.bf16 %v312, %v311
        %v314 = vld [vmem:[%s2] sm:$0xff]
        %v315 = vld [vmem:[%s2 + $0x8] sm:$0xff]
        %v316 = vld [vmem:[%s2 + $0x10] sm:$0xff]
        %v317 = vld [vmem:[%s2 + $0x18] sm:$0xff]
        %v318 = vld [vmem:[%s2 + $0x20] sm:$0xff]
        %v319 = vld [vmem:[%s2 + $0x28] sm:$0xff]
        %v320 = vld [vmem:[%s2 + $0x30] sm:$0xff]
        %v321 = vld [vmem:[%s2 + $0x38] sm:$0xff]
        %v322 = vld [vmem:[%s3] sm:$0x3]
        %v324 = vlaneseq
        %v325 = vshrl.u32 %v324, 7
        %v326 = vsub.s32 0, %v325
        %v327 = vrot.slane %v322, %v326
        %v328 = vlaneseq
        %v329 = vshrl.u32 %v328, 7
        %v330 = vsub.s32 1, %v329
        %v331 = vrot.slane %v322, %v330
        %v342 = vunpack.c.l.b16 %v314
        %v343 = vunpack.c.h.b16 %v314
        %v344 = vunpack.c.l.b16 %v315
        %v345 = vunpack.c.h.b16 %v315
        %v346 = vunpack.c.l.b16 %v316
        %v347 = vunpack.c.h.b16 %v316
        %v348 = vunpack.c.l.b16 %v317
        %v349 = vunpack.c.h.b16 %v317
        %v350 = vunpack.c.l.b16 %v318
        %v351 = vunpack.c.h.b16 %v318
        %v352 = vunpack.c.l.b16 %v319
        %v353 = vunpack.c.h.b16 %v319
        %v354 = vunpack.c.l.b16 %v320
        %v355 = vunpack.c.h.b16 %v320
        %v356 = vunpack.c.l.b16 %v321
        %v357 = vunpack.c.h.b16 %v321
        %v358 = vpack.c.b16 %v344, %v342
        %v359 = vpack.c.b16 %v345, %v343
        %v360 = vpack.c.b16 %v348, %v346
        %v361 = vpack.c.b16 %v349, %v347
        %v362 = vpack.c.b16 %v352, %v350
        %v363 = vpack.c.b16 %v353, %v351
        %v364 = vpack.c.b16 %v356, %v354
        %v365 = vpack.c.b16 %v357, %v355
        %vm374 = vcmask 523264
        %v376 = vsel %vm374, %v313, 0
        %378 = vmatprep.subr.bf16.mxu0 0
        %379 = vmatpush1.bf16.msra.mxu0 0
        %380 = vmatprep.subr.bf16.mxu0 0
        %381 = vmatpush1.bf16.msra.mxu0 0
        %382 = vmatprep.subr.bf16.mxu0 0
        %383 = vmatpush1.bf16.msra.mxu0 0
        %384 = vmatprep.subr.bf16.mxu0 0
        %385 = vmatpush1.bf16.msra.mxu0 0
        %386 = vmatprep.subr.bf16.mxu0 %v365
        %387 = vmatpush1.bf16.msra.mxu0 %v364
        %388 = vmatprep.subr.bf16.mxu0 %v363
        %389 = vmatpush1.bf16.msra.mxu0 %v362
        %390 = vmatprep.subr.bf16.mxu0 %v361
        %391 = vmatpush1.bf16.msra.mxu0 %v360
        %392 = vmatprep.subr.bf16.mxu0 %v359
        %393 = vmatpush1.bf16.msra.mxu0 %v358
        %394 = vmatprep.subr.bf16.mxu0 0
        %395 = vmatpush2.bf16.msra.mxu0 0
        %396 = vmatprep.subr.bf16.mxu0 0
        %397 = vmatpush2.bf16.msra.mxu0 0
        %398 = vmatprep.subr.bf16.mxu0 0
        %399 = vmatpush2.bf16.msra.mxu0 0
        %400 = vmatprep.subr.bf16.mxu0 0
        %401 = vmatpush2.bf16.msra.mxu0 0
        %402 = vmatprep.subr.bf16.mxu0 0
        %403 = vmatpush2.bf16.msra.mxu0 0
        %404 = vmatprep.subr.bf16.mxu0 0
        %405 = vmatpush2.bf16.msra.mxu0 0
        %406 = vmatprep.subr.bf16.mxu0 0
        %407 = vmatpush2.bf16.msra.mxu0 0
        %408 = vmatprep.subr.bf16.mxu0 0
        %409 = vmatpush2.bf16.msra.mxu0 0
        %410 = vmatprep.mubr.bf16.mxu0 0
        %411 = vmatmul.mubr.bf16.gmra.mxu0 %v376
        %v412 = vpop.f32.mrf.mxu0
        %v413 = vadd.f32 %v327, %v412
        %v414 = vpop.f32.mrf.mxu0
        %v415 = vadd.f32 %v331, %v414
        %v416 = vpop.f32.mrf.mxu0
        %v417 = vadd.f32 %v327, %v416
        %v418 = vpop.f32.mrf.mxu0
        %v419 = vadd.f32 %v331, %v418
        %420 = vdwg.mxu0
        %vm421 = vcmp.gt.f32.partialorder %v413, 0.0
        %vm422 = vcmp.gt.f32.partialorder %v415, 0.0
        %vm423 = vcmp.gt.f32.partialorder %v417, 0.0
        %vm424 = vcmp.gt.f32.partialorder %v419, 0.0
        %v425 = vstv %s309
        %v426 = vmul.f32 %v425, %v413
        %v427 = vmul.f32 %v425, %v415
        %v428 = vmul.f32 %v425, %v417
        %v429 = vmul.f32 %v425, %v419
        %v430 = vsel %vm421, %v413, %v426
        %v431 = vsel %vm422, %v415, %v427
        %v432 = vsel %vm423, %v417, %v428
        %v433 = vsel %vm424, %v419, %v429
        %434 = vst [vmem:[%s287] sm:$0xff] %v430
        %435 = vst [vmem:[%s287 + $0x8] sm:$0xff] %v431
        %436 = vst [vmem:[%s287 + $0x10] sm:$0xff] %v432
        %437 = vst [vmem:[%s287 + $0x18] sm:$0xff] %v433
        %v438 = vpack.c.bf16 %v432, %v430
        %v439 = vpack.c.bf16 %v433, %v431
        %v440 = vld [vmem:[%s4] sm:$0xf]
        %v441 = vld [vmem:[%s4 + $0x4] sm:$0xf]
        %v442 = vld [vmem:[%s4 + $0x8] sm:$0xf]
        %v443 = vld [vmem:[%s4 + $0xc] sm:$0xf]
        %v444 = vld [vmem:[%s4 + $0x10] sm:$0xf]
        %v445 = vld [vmem:[%s4 + $0x14] sm:$0xf]
        %v446 = vld [vmem:[%s4 + $0x18] sm:$0xf]
        %v447 = vld [vmem:[%s4 + $0x1c] sm:$0xf]
        %v448 = vld [vmem:[%s4 + $0x20] sm:$0xf]
        %v449 = vld [vmem:[%s4 + $0x24] sm:$0xf]
        %v450 = vld [vmem:[%s4 + $0x28] sm:$0xf]
        %v451 = vld [vmem:[%s4 + $0x2c] sm:$0xf]
        %v452 = vld [vmem:[%s4 + $0x30] sm:$0xf]
        %v453 = vld [vmem:[%s4 + $0x34] sm:$0xf]
        %v454 = vld [vmem:[%s4 + $0x38] sm:$0xf]
        %v455 = vld [vmem:[%s4 + $0x3c] sm:$0xf]
        %v456 = vld [vmem:[%s4 + $0x40] sm:$0xf]
        %v457 = vld [vmem:[%s4 + $0x44] sm:$0xf]
        %v458 = vld [vmem:[%s4 + $0x48] sm:$0xf]
        %v459 = vld [vmem:[%s4 + $0x4c] sm:$0xf]
        %v460 = vld [vmem:[%s4 + $0x50] sm:$0xf]
        %v461 = vld [vmem:[%s4 + $0x54] sm:$0xf]
        %v462 = vld [vmem:[%s4 + $0x58] sm:$0xf]
        %v463 = vld [vmem:[%s4 + $0x5c] sm:$0xf]
        %v464 = vld [vmem:[%s4 + $0x60] sm:$0xf]
        %v465 = vld [vmem:[%s4 + $0x64] sm:$0xf]
        %v466 = vld [vmem:[%s4 + $0x68] sm:$0xf]
        %v467 = vld [vmem:[%s4 + $0x6c] sm:$0xf]
        %v468 = vld [vmem:[%s4 + $0x70] sm:$0xf]
        %v469 = vld [vmem:[%s4 + $0x74] sm:$0xf]
        %v470 = vld [vmem:[%s4 + $0x78] sm:$0xf]
        %v471 = vld [vmem:[%s4 + $0x7c] sm:$0xf]
        %v472 = vld [vmem:[%s5] sm:$0x1]
        %v474 = vlaneseq
        %v475 = vshrl.u32 %v474, 7
        %v476 = vsub.s32 0, %v475
        %v477 = vrot.slane %v472, %v476
        %v511 = vunpack.c.l.b16 %v440
        %v512 = vunpack.c.l.b16 %v441
        %v513 = vunpack.c.l.b16 %v442
        %v514 = vunpack.c.l.b16 %v443
        %v515 = vunpack.c.l.b16 %v444
        %v516 = vunpack.c.l.b16 %v445
        %v517 = vunpack.c.l.b16 %v446
        %v518 = vunpack.c.l.b16 %v447
        %v519 = vunpack.c.l.b16 %v448
        %v520 = vunpack.c.l.b16 %v449
        %v521 = vunpack.c.l.b16 %v450
        %v522 = vunpack.c.l.b16 %v451
        %v523 = vunpack.c.l.b16 %v452
        %v524 = vunpack.c.l.b16 %v453
        %v525 = vunpack.c.l.b16 %v454
        %v526 = vunpack.c.l.b16 %v455
        %v527 = vunpack.c.l.b16 %v456
        %v528 = vunpack.c.l.b16 %v457
        %v529 = vunpack.c.l.b16 %v458
        %v530 = vunpack.c.l.b16 %v459
        %v531 = vunpack.c.l.b16 %v460
        %v532 = vunpack.c.l.b16 %v461
        %v533 = vunpack.c.l.b16 %v462
        %v534 = vunpack.c.l.b16 %v463
        %v535 = vunpack.c.l.b16 %v464
        %v536 = vunpack.c.l.b16 %v465
        %v537 = vunpack.c.l.b16 %v466
        %v538 = vunpack.c.l.b16 %v467
        %v539 = vunpack.c.l.b16 %v468
        %v540 = vunpack.c.l.b16 %v469
        %v541 = vunpack.c.l.b16 %v470
        %v542 = vunpack.c.l.b16 %v471
        %v543 = vpack.c.b16 %v512, %v511
        %v544 = vpack.c.b16 %v514, %v513
        %v545 = vpack.c.b16 %v516, %v515
        %v546 = vpack.c.b16 %v518, %v517
        %v547 = vpack.c.b16 %v520, %v519
        %v548 = vpack.c.b16 %v522, %v521
        %v549 = vpack.c.b16 %v524, %v523
        %v550 = vpack.c.b16 %v526, %v525
        %v551 = vpack.c.b16 %v528, %v527
        %v552 = vpack.c.b16 %v530, %v529
        %v553 = vpack.c.b16 %v532, %v531
        %v554 = vpack.c.b16 %v534, %v533
        %v555 = vpack.c.b16 %v536, %v535
        %v556 = vpack.c.b16 %v538, %v537
        %v557 = vpack.c.b16 %v540, %v539
        %v558 = vpack.c.b16 %v542, %v541
        %575 = vmatprep.subr.bf16.mxu0 0
        %576 = vmatpush1.bf16.msra.mxu0 %v550
        %577 = vmatprep.subr.bf16.mxu0 0
        %578 = vmatpush1.bf16.msra.mxu0 %v549
        %579 = vmatprep.subr.bf16.mxu0 0
        %580 = vmatpush1.bf16.msra.mxu0 %v548
        %581 = vmatprep.subr.bf16.mxu0 0
        %582 = vmatpush1.bf16.msra.mxu0 %v547
        %583 = vmatprep.subr.bf16.mxu0 0
        %584 = vmatpush1.bf16.msra.mxu0 %v546
        %585 = vmatprep.subr.bf16.mxu0 0
        %586 = vmatpush1.bf16.msra.mxu0 %v545
        %587 = vmatprep.subr.bf16.mxu0 0
        %588 = vmatpush1.bf16.msra.mxu0 %v544
        %589 = vmatprep.subr.bf16.mxu0 0
        %590 = vmatpush1.bf16.msra.mxu0 %v543
        %591 = vmatprep.subr.bf16.mxu0 0
        %592 = vmatpush2.bf16.msra.mxu0 %v558
        %593 = vmatprep.subr.bf16.mxu0 0
        %594 = vmatpush2.bf16.msra.mxu0 %v557
        %595 = vmatprep.subr.bf16.mxu0 0
        %596 = vmatpush2.bf16.msra.mxu0 %v556
        %597 = vmatprep.subr.bf16.mxu0 0
        %598 = vmatpush2.bf16.msra.mxu0 %v555
        %599 = vmatprep.subr.bf16.mxu0 0
        %600 = vmatpush2.bf16.msra.mxu0 %v554
        %601 = vmatprep.subr.bf16.mxu0 0
        %602 = vmatpush2.bf16.msra.mxu0 %v553
        %603 = vmatprep.subr.bf16.mxu0 0
        %604 = vmatpush2.bf16.msra.mxu0 %v552
        %605 = vmatprep.subr.bf16.mxu0 0
        %606 = vmatpush2.bf16.msra.mxu0 %v551
        %607 = vmatprep.mubr.bf16.mxu0 %v439
        %608 = vmatmul.mubr.bf16.gmra.mxu0 %v438
        %v609 = vpop.f32.mrf.mxu0
        %v610 = vadd.f32 %v477, %v609
        %v611 = vpop.f32.mrf.mxu0
        %v612 = vpop.f32.mrf.mxu0
        %v613 = vadd.f32 %v477, %v612
        %v614 = vpop.f32.mrf.mxu0
        %615 = vdwg.mxu0
        %vm616 = vcmp.gt.f32.partialorder %v610, 0.0
        %vm617 = vcmp.gt.f32.partialorder %v613, 0.0
        %v618 = vstv %s310
        %v619 = vmul.f32 %v618, %v610
        %v620 = vmul.f32 %v618, %v613
        %v621 = vsel %vm616, %v610, %v619
        %v622 = vsel %vm617, %v613, %v620
        %vm623 = vcmask 64512
        %v624 = vsel %vm623, %v621, -inf
        %625 = vmax.xlane.f32.xlu0 %v624
        %v626 = vpop.xlane.xlu0 %625
        %v627 = vsel %vm623, %v622, -inf
        %628 = vmax.xlane.f32.xlu0 %v627
        %v629 = vpop.xlane.xlu0 %628
        %v630 = vsub.f32 %v621, %v626
        %v631 = vsub.f32 %v622, %v629
        %v632 = vmul.f32 %v630, 1.442695
        %v633 = vpow.pop %v632
        %v634 = vmul.f32 %v631, 1.442695
        %v635 = vpow.pop %v634
        %v636 = vsel %vm623, %v633, 0.0
        %637 = vadd.xlane.f32.xlu0 %v636
        %v638 = vpop.xlane.xlu0 %637
        %v639 = vsel %vm623, %v635, 0.0
        %640 = vadd.xlane.f32.xlu0 %v639
        %v641 = vpop.xlane.xlu0 %640
        %v642 = vrcp.pop %v638
        %v643 = vrcp.pop %v641
        %v644 = vmul.f32 %v633, %v642
        %v645 = vmul.f32 %v635, %v643
        %646 = vst.msk [vmem:[%s306] sm:$0xff] %vm623, %v644
        %647 = vst.msk [vmem:[%s306 + $0x8] sm:$0xff] %vm623, %v645
        %s648 = sand.u32 %s162, 1
        %s649 = scalar_lea.sflag [#allocation3], %s648
        %s650 = sand.u32 %s162, 1
        %s651 = smul.addr %s650, 32
        %s652 = scalar_lea.vmem [#allocation5], %s651
        %s653 = smul.u32 2, %s23
        %p654 = scmp.lt.s32.totalorder %s653, 7
        %s655 = scalar_select %p654, %s653, 7
        %s656 = smul.addr %s655, 8
        %s657 = scalar_lea.vmem %s7, %s656
        // Predicated region
        $region49: #{tpu_custom_call.1} parent=43 // pred_check
          %p658 = pneg %p172
        $region50: #{tpu_custom_call.1} parent=43 // pred_check_branch
          %660 = sbr.rel (%p658) target = $region52
        $region51: #{tpu_custom_call.1} parent=43 // pred_region
          %s661 = smul.u32 2, %s23
          %s663 = ssub.s32 512, 512
          %664 = vsyncadd %s649, %s663
          %s665 = smul.addr %s661, 2
          %s666 = smul.addr %s665, 128
          %s667 = scalar_lea.hbm %s6, %s666
          %s668 = sshll.u32 %s652, 4
          %s669 = int_to_ptr.vmem [resolvable:$true] %s668
          %674 = dma.vmem_to_hbm [thread:$0]  %s669, 512, %s667, %s649, 256, 256, 16
        $region52: #{tpu_custom_call.1} parent=43 // pred_fallthru
          _
        // Predicated region
        $region53: #{tpu_custom_call.1} parent=43 // pred_check
          %p675 = pneg %p198
        $region54: #{tpu_custom_call.1} parent=43 // pred_check_branch
          %677 = sbr.rel (%p675) target = $region56
        $region55: #{tpu_custom_call.1} parent=43 // pred_region
          %s678 = smul.u32 2, %s23
        $region56: #{tpu_custom_call.1} parent=43 // pred_fallthru
          _
      $region44: #{tpu_custom_call.1} parent=5 // pred_fallthru
        _
      %p679 = scmp.le.s32.totalorder 2, %s18
      // Predicated region
      $region57: #{tpu_custom_call.1} parent=5 // pred_check
        %p680 = pneg %p679
      $region58: #{tpu_custom_call.1} parent=5 // pred_check_branch
        %682 = sbr.rel (%p680) target = $region60
      $region59: #{tpu_custom_call.1} parent=5 // pred_region
        %s683 = ssub.s32 %s18, 2
        // Predicated region
        $region61: #{tpu_custom_call.1} parent=59 // pred_check
          %p684 = pneg %p178
        $region62: #{tpu_custom_call.1} parent=59 // pred_check_branch
          %686 = sbr.rel (%p684) target = $region64
        $region63: #{tpu_custom_call.1} parent=59 // pred_region
          %s687 = sand.u32 %s163, 1
          %s688 = scalar_lea.sflag [#allocation3], %s687
          %s689 = sand.u32 %s163, 1
          %s690 = smul.addr %s689, 32
          %s691 = scalar_lea.vmem [#allocation5], %s690
          %692 = dma.done %s688, 512
        $region64: #{tpu_custom_call.1} parent=59 // pred_fallthru
          _
        // Predicated region
        $region65: #{tpu_custom_call.1} parent=59 // pred_check
          %p693 = pneg %p204
        $region66: #{tpu_custom_call.1} parent=59 // pred_check_branch
          %695 = sbr.rel (%p693) target = $region68
        $region67: #{tpu_custom_call.1} parent=59 // pred_region
          %s696 = smul.u32 2, %s24
          %p697 = scmp.lt.s32.totalorder %s696, 7
          %s698 = scalar_select %p697, %s696, 7
          %s699 = smul.addr %s698, 8
          %s700 = scalar_lea.vmem %s7, %s699
        $region68: #{tpu_custom_call.1} parent=59 // pred_fallthru
          _
      $region60: #{tpu_custom_call.1} parent=5 // pred_fallthru
        _
    $region6: #{tpu_custom_call.1} parent=1 // loop_footer
      %s22 = sadd.s32 1, %s18
    $region7: #{tpu_custom_call.1} parent=1 // loop_footer_branch
      %17 = sbr.rel target = $region3
    $region8: #{tpu_custom_call.1} parent=1 // loop_exit
      _
    %701 = vsyncpa [#allocation3], 1
    %s702 = scalar_lea.sflag [#allocation3], 1
    %703 = vsyncpa %s702, 1
    %704 = vsyncpa [#allocation4], 1
    %s705 = scalar_lea.sflag [#allocation4], 1
    %706 = vsyncpa %s705, 1

</llo_original>
